<compile_context>
chip_gen: v6e
topology: v6e:2x2x1
jax: 0.10.0
libtpu: 0.0.40
codegen_flags: <defaults>
</compile_context>

<pallas_src>
import numpy as np

import jax
import jax.numpy as jnp
from jax.experimental import pallas as pl
from jax.experimental.pallas import tpu as pltpu


def _round_up(x, m):
    return -(-x // m) * m


def _avg_weight_t(length, kernel_size, stride, pad, l_out):
    """Banded averaging matrix W_T (l_out, L): out[t] = sum_l W_T[t,l]*x[l]."""
    w = np.zeros((l_out, length), np.float32)
    for t in range(l_out):
        base = t * stride - pad
        for j in range(kernel_size):
            src = min(max(base + j, 0), length - 1)   # replicate padding
            w[t, src] += 1.0
    return w / np.float32(kernel_size)


def _moving_avg_kernel(w_ref, x_ref, o_ref):
    """w_ref: (L_out, L) f32; x_ref: (Bb, L, C); o_ref: (Bb, L_out, C)."""
    b_blk = x_ref.shape[0]
    w = w_ref[...]          # hoisted; W block index is constant -> stays resident

    # One MXU matmul per batch row: (L_out, L) @ (L, C) -> (L_out, C).
    # No padding scratch, no per-tap slices, no transposes anywhere.
    @pl.loop(0, b_blk)
    def _(b):
        row = jnp.dot(w, x_ref[b].astype(jnp.float32),
                      preferred_element_type=jnp.float32,
                      precision=jax.lax.Precision.HIGHEST)
        o_ref[b] = row.astype(o_ref.dtype)


def moving_average(x, kernel_size, stride=1):
    """x: (B, L, C) -> (B, L_out, C); matches the PyTorch moving_average."""
    B, L, C = x.shape
    pad = (kernel_size - 1) // 2
    l_out = (L + 2 * pad - kernel_size) // stride + 1
    assert l_out >= 1, "kernel_size too large for this sequence length"

    w_t = jnp.asarray(_avg_weight_t(L, kernel_size, stride, pad, l_out))

    # ---- VMEM-budgeted batch blocking (use (8,128)-padded tile sizes). ----
    itemsize = jnp.dtype(x.dtype).itemsize
    in_row = _round_up(L, 8) * _round_up(C, 128) * itemsize      # per batch row
    out_row = _round_up(l_out, 8) * _round_up(C, 128) * itemsize
    w_bytes = _round_up(l_out, 8) * _round_up(L, 128) * 4

    try:
        vmem_cap = int(pltpu.get_tpu_info().vmem_capacity_bytes)
    except Exception:
        vmem_cap = 64 * 1024 * 1024          # conservative (v7x-sized) fallback
    usable = min(vmem_cap // 2, 64 * 1024 * 1024)   # headroom for double buffers

    per_row = 2 * (in_row + out_row)         # double-buffered input + output
    b_blk = max(1, min(B, (usable - 2 * w_bytes) // max(per_row, 1)))

    # >= 2 grid steps per TensorCore (v7x dual-core) when that still keeps the
    # blocks >= ~512 KiB of padded VMEM (big DMAs, amortized step overhead).
    min_steps = 4
    cand = -(-B // min_steps)
    if cand < b_blk and cand * (in_row + out_row) >= (512 << 10):
        b_blk = cand
    grid = (pl.cdiv(B, b_blk),)

    vmem_limit = int(min(vmem_cap * 3 // 4, 96 * 1024 * 1024))

    out = pl.pallas_call(
        _moving_avg_kernel,
        out_shape=jax.ShapeDtypeStruct((B, l_out, C), x.dtype),
        grid_spec=pltpu.PrefetchScalarGridSpec(
            num_scalar_prefetch=0,
            grid=grid,
            in_specs=[
                pl.BlockSpec((l_out, L), lambda i: (0, 0)),        # W_T resident
                pl.BlockSpec((b_blk, L, C), lambda i: (i, 0, 0)),  # natural layout
            ],
            out_specs=pl.BlockSpec((b_blk, l_out, C), lambda i: (i, 0, 0)),
        ),
        compiler_params=pltpu.CompilerParams(
            dimension_semantics=("parallel",),
            vmem_limit_bytes=vmem_limit),
    )(w_t, x)
    return out


def _reference(x, kernel_size, stride=1):
    # Independent pure-JAX reference mimicking the PyTorch module
    # (explicit replicate-pad + sliding-window gather + mean).
    B, L, C = x.shape
    pad = (kernel_size - 1) // 2
    front = jnp.broadcast_to(x[:, :1, :], (B, pad, C))
    end = jnp.broadcast_to(x[:, -1:, :], (B, pad, C))
    xp = jnp.concatenate([front, x, end], axis=1)
    l_pad = xp.shape[1]
    l_out = (l_pad - kernel_size) // stride + 1
    idx = jnp.arange(l_out)[:, None] * stride + jnp.arange(kernel_size)[None, :]
    windows = xp[:, idx, :]                  # (B, l_out, k, C)
    return windows.mean(axis=2)


if __name__ == "__main__":
    key = jax.random.PRNGKey(0)

    # (B, L, C), kernel_size, stride -- DLinear-style configurations.
    cases = [
        ((2, 16, 8), 5, 1),      # small, stride 1
        ((4, 24, 7), 6, 2),      # even kernel, odd C, stride 2
        ((2, 96, 21), 25, 1),    # classic DLinear decomposition settings
        ((64, 512, 21), 25, 1),  # exercises multi-step grid / resident W
    ]

    for shape, k, s in cases:
        key, sub = jax.random.split(key)
        x = jax.random.normal(sub, shape, dtype=jnp.float32)

        y = jax.block_until_ready(moving_average(x, k, s))
        y_ref = _reference(x, k, s)

        assert y.shape == y_ref.shape, (shape, k, s, y.shape, y_ref.shape)
        assert jnp.allclose(y, y_ref, atol=2e-5, rtol=2e-5), (shape, k, s)

    print("KERNEL_OK")
</pallas_src>

<mosaic_0001>
module attributes {stable_mosaic.version = 11 : i64} {
  func.func @_moving_avg_kernel(%arg0: i32, %arg1: memref<16x16xf32, #tpu.memory_space<vmem>>, %arg2: memref<2x16x8xf32, #tpu.memory_space<vmem>>, %arg3: memref<2x16x8xf32, #tpu.memory_space<vmem>>) attributes {dimension_semantics = [#tpu.dimension_semantics<parallel>], iteration_bounds = array<i64: 1>, scalar_prefetch = 0 : i64, scratch_operands = 0 : i64, tpu.core_type = #tpu.core_type<tc>, window_params = [{pipeline_mode = #tpu.pipeline_mode<synchronous>, transform_indices = @transform_0, window_bounds = array<i64: 16, 16>}, {transform_indices = @transform_1, window_bounds = array<i64: 2, 16, 8>}, {transform_indices = @transform_2, window_bounds = array<i64: 2, 16, 8>}]} {
    %c0 = arith.constant 0 : index
    %c0_0 = arith.constant 0 : index
    %0 = vector.load %arg1[%c0, %c0_0] : memref<16x16xf32, #tpu.memory_space<vmem>>, vector<16x16xf32>
    %c0_i32 = arith.constant 0 : i32
    %c2_i32 = arith.constant 2 : i32
    %1 = arith.addi %c0_i32, %c2_i32 : i32
    %c1_i32 = arith.constant 1 : i32
    scf.for %arg4 = %c0_i32 to %1 step %c1_i32  : i32 {
      %c1_i32_2 = arith.constant 1 : i32
      %2 = arith.muli %arg4, %c1_i32_2 : i32
      %c0_i32_3 = arith.constant 0 : i32
      %3 = arith.addi %c0_i32_3, %2 : i32
      %4 = arith.index_cast %3 : i32 to index
      %c0_4 = arith.constant 0 : index
      %c0_5 = arith.constant 0 : index
      %5 = vector.load %arg2[%4, %c0_4, %c0_5] : memref<2x16x8xf32, #tpu.memory_space<vmem>>, vector<1x16x8xf32>
      %6 = vector.shape_cast %5 : vector<1x16x8xf32> to vector<16x8xf32>
      %cst = arith.constant dense<0.000000e+00> : vector<16x8xf32>
      %7 = tpu.matmul %0, %6, %cst {dimension_numbers = #tpu.dot_dimension_numbers<[1], [0], [0], [1], [0, 0, 1, 1], [], []>, precision = #tpu.contract_precision<fp32>} : vector<16x16xf32>, vector<16x8xf32>, vector<16x8xf32> -> vector<16x8xf32>
      %8 = arith.index_cast %3 : i32 to index
      %c0_6 = arith.constant 0 : index
      %c0_7 = arith.constant 0 : index
      %9 = vector.load %arg3[%8, %c0_6, %c0_7] : memref<2x16x8xf32, #tpu.memory_space<vmem>>, vector<1x16x8xf32>
      %10 = vector.shape_cast %9 : vector<1x16x8xf32> to vector<16x8xf32>
      %11 = vector.shape_cast %7 : vector<16x8xf32> to vector<1x16x8xf32>
      tpu.vector_store %arg3[%8, %c0_6, %c0_7], %11 {strides = array<i32>} : memref<2x16x8xf32, #tpu.memory_space<vmem>>, vector<1x16x8xf32>,
    }
    %c2_i32_1 = arith.constant 2 : i32
    return
  }
  func.func @transform_0(%arg0: i32) -> (i32, i32) {
    %c0_i32 = arith.constant 0 : i32
    %c0_i32_0 = arith.constant 0 : i32
    %c0_i32_1 = arith.constant 0 : i32
    return %c0_i32, %c0_i32_0 : i32, i32
  }
  func.func @transform_1(%arg0: i32) -> (i32, i32, i32) {
    %c0_i32 = arith.constant 0 : i32
    %c0_i32_0 = arith.constant 0 : i32
    %c0_i32_1 = arith.constant 0 : i32
    return %arg0, %c0_i32, %c0_i32_0 : i32, i32, i32
  }
  func.func @transform_2(%arg0: i32) -> (i32, i32, i32) {
    %c0_i32 = arith.constant 0 : i32
    %c0_i32_0 = arith.constant 0 : i32
    %c0_i32_1 = arith.constant 0 : i32
    return %arg0, %c0_i32, %c0_i32_0 : i32, i32, i32
  }
}

</mosaic_0001>

<llo_original>
// kernel: tpu_custom_call.1
$region0: #{tpu_custom_call.1}
  #allocation0 [shape = 'u32[]', space=smem, size = 0x4, offset = 0x4, fixed_abs, tag = 'smem constant byte address 0x4 - core index']
  #allocation1 [shape = 'u32[144,128]{1,0:T(1,128)}', space=vmem, size = 0x12000, scoped, tag = 'internal scratch']
  %s0 = inlined_call_operand.vmem [shape: f32[16,16], index: 0, kind: input, shape index: {}]
  %s1 = inlined_call_operand.vmem [shape: f32[2,16,8], index: 1, kind: input, shape index: {}]
  %s2 = inlined_call_operand.vmem [shape: f32[2,16,8], index: 2, kind: output, shape index: {}]
  %s3 = sld [smem:[#allocation0]]
  $region25: #{tpu_custom_call.1} parent=0
    _
  %s5 = ssub.s32 1, %s3
  %s6 = scalar_select 0, %s5, %s3
  // Predicated region
  $region2: #{tpu_custom_call.1} parent=0 // pred_check
    _
  $region3: #{tpu_custom_call.1} parent=0 // pred_check_branch
    %8 = sbr.rel (0) target = $region5
  $region4: #{tpu_custom_call.1} parent=0 // pred_region
    _
  $region5: #{tpu_custom_call.1} parent=0 // pred_fallthru
    _
  // Predicated region
  $region6: #{tpu_custom_call.1} parent=0 // pred_check
    _
  $region7: #{tpu_custom_call.1} parent=0 // pred_check_branch
    %10 = sbr.rel (0) target = $region9
  $region8: #{tpu_custom_call.1} parent=0 // pred_region
    _
  $region9: #{tpu_custom_call.1} parent=0 // pred_fallthru
    _
  %v11 = vld [vmem:[%s0] sm:$0xff]
  %v12 = vld [vmem:[%s0 + $0x8] sm:$0xff]
  loop: start=0, step=1, limit=2
  $region10: #{tpu_custom_call.1} parent=0 // loop_pre_header
    _
  $region11: #{tpu_custom_call.1} parent=0 // loop_header
    %s14 = sphi 0, %s18
    %p15 = scmp.ge.s32.totalorder %s14, 2
  $region12: #{tpu_custom_call.1} parent=0 // loop_header_branch
    %17 = sbr.rel (%p15) target = $region16
  $region13: #{tpu_custom_call.1} parent=0 // loop_body
    %s19 = smul.u32 %s14, 16
    %s20 = scalar_lea.vmem %s1, %s19
    %v21 = vld [vmem:[%s20] sm:$0xff]
    %v22 = vld [vmem:[%s20 + $0x8] sm:$0xff]
    %vm23 = vcmask 130048
    %v25 = vsel %vm23, %v11, 0
    %v28 = vsel %vm23, %v12, 0
    %30 = vmatprep.subr.mxu0 0.0
    %31 = vmatpush1.msra.mxu0 0.0
    %32 = vmatprep.subr.mxu0 0.0
    %33 = vmatpush1.msra.mxu0 0.0
    %34 = vmatprep.subr.mxu0 0.0
    %35 = vmatpush1.msra.mxu0 0.0
    %36 = vmatprep.subr.mxu0 0.0
    %37 = vmatpush1.msra.mxu0 0.0
    %38 = vmatprep.subr.mxu0 0.0
    %39 = vmatpush1.msra.mxu0 0.0
    %40 = vmatprep.subr.mxu0 0.0
    %41 = vmatpush1.msra.mxu0 0.0
    %42 = vmatprep.subr.mxu0 0.0
    %43 = vmatpush1.msra.mxu0 0.0
    %44 = vmatprep.subr.mxu0 0.0
    %45 = vmatpush1.msra.mxu0 0.0
    %46 = vmatprep.subr.mxu0 0.0
    %47 = vmatpush1.msra.mxu0 0.0
    %48 = vmatprep.subr.mxu0 0.0
    %49 = vmatpush1.msra.mxu0 0.0
    %50 = vmatprep.subr.mxu0 0.0
    %51 = vmatpush1.msra.mxu0 0.0
    %52 = vmatprep.subr.mxu0 0.0
    %53 = vmatpush1.msra.mxu0 0.0
    %54 = vmatprep.subr.mxu0 0.0
    %55 = vmatpush1.msra.mxu0 0.0
    %56 = vmatprep.subr.mxu0 0.0
    %57 = vmatpush1.msra.mxu0 0.0
    %58 = vmatprep.subr.mxu0 0.0
    %v59 = vand.u32 %v22, 4294901760
    %60 = vmatpush1.msra.mxu0 %v59
    %61 = vmatprep.subr.mxu0 0.0
    %v62 = vand.u32 %v21, 4294901760
    %63 = vmatpush1.msra.mxu0 %v62
    %64 = vmatprep.subr.mxu0 0.0
    %65 = vmatpush2.msra.mxu0 0.0
    %66 = vmatprep.subr.mxu0 0.0
    %67 = vmatpush2.msra.mxu0 0.0
    %68 = vmatprep.subr.mxu0 0.0
    %69 = vmatpush2.msra.mxu0 0.0
    %70 = vmatprep.subr.mxu0 0.0
    %71 = vmatpush2.msra.mxu0 0.0
    %72 = vmatprep.subr.mxu0 0.0
    %73 = vmatpush2.msra.mxu0 0.0
    %74 = vmatprep.subr.mxu0 0.0
    %75 = vmatpush2.msra.mxu0 0.0
    %76 = vmatprep.subr.mxu0 0.0
    %77 = vmatpush2.msra.mxu0 0.0
    %78 = vmatprep.subr.mxu0 0.0
    %79 = vmatpush2.msra.mxu0 0.0
    %80 = vmatprep.subr.mxu0 0.0
    %81 = vmatpush2.msra.mxu0 0.0
    %82 = vmatprep.subr.mxu0 0.0
    %83 = vmatpush2.msra.mxu0 0.0
    %84 = vmatprep.subr.mxu0 0.0
    %85 = vmatpush2.msra.mxu0 0.0
    %86 = vmatprep.subr.mxu0 0.0
    %87 = vmatpush2.msra.mxu0 0.0
    %88 = vmatprep.subr.mxu0 0.0
    %89 = vmatpush2.msra.mxu0 0.0
    %90 = vmatprep.subr.mxu0 0.0
    %91 = vmatpush2.msra.mxu0 0.0
    %92 = vmatprep.subr.mxu0 0.0
    %93 = vmatpush2.msra.mxu0 0.0
    %94 = vmatprep.subr.mxu0 0.0
    %95 = vmatpush2.msra.mxu0 0.0
    %96 = vmatprep.mubr.f32.mxu0 0.0
    %v97 = vand.u32 %v25, 4294901760
    %v98 = vsub.f32 %v25, %v97
    %v99 = vand.u32 %v98, 4294901760
    %v100 = vsub.f32 %v98, %v99
    %v101 = vand.u32 %v100, 4294901760
    %102 = vmatmul.mubr.f32.gmra.mxu0 %v101
    %v103 = vpop.f32.mrf.mxu0
    %v104 = vadd.f32 0.0, %v103
    %v105 = vpop.f32.mrf.mxu0
    %106 = vmatprep.mubr.f32.mxu0 0.0
    %v107 = vand.u32 %v28, 4294901760
    %v108 = vsub.f32 %v28, %v107
    %v109 = vand.u32 %v108, 4294901760
    %v110 = vsub.f32 %v108, %v109
    %v111 = vand.u32 %v110, 4294901760
    %112 = vmatmul.mubr.f32.gmra.mxu0 %v111
    %v113 = vpop.f32.mrf.mxu0
    %v114 = vadd.f32 0.0, %v113
    %v115 = vpop.f32.mrf.mxu0
    %116 = vdwg.mxu0
    %117 = vmatprep.subr.mxu0 0.0
    %118 = vmatpush1.msra.mxu0 0.0
    %119 = vmatprep.subr.mxu0 0.0
    %120 = vmatpush1.msra.mxu0 0.0
    %121 = vmatprep.subr.mxu0 0.0
    %122 = vmatpush1.msra.mxu0 0.0
    %123 = vmatprep.subr.mxu0 0.0
    %124 = vmatpush1.msra.mxu0 0.0
    %125 = vmatprep.subr.mxu0 0.0
    %126 = vmatpush1.msra.mxu0 0.0
    %127 = vmatprep.subr.mxu0 0.0
    %128 = vmatpush1.msra.mxu0 0.0
    %129 = vmatprep.subr.mxu0 0.0
    %130 = vmatpush1.msra.mxu0 0.0
    %131 = vmatprep.subr.mxu0 0.0
    %132 = vmatpush1.msra.mxu0 0.0
    %133 = vmatprep.subr.mxu0 0.0
    %134 = vmatpush1.msra.mxu0 0.0
    %135 = vmatprep.subr.mxu0 0.0
    %136 = vmatpush1.msra.mxu0 0.0
    %137 = vmatprep.subr.mxu0 0.0
    %138 = vmatpush1.msra.mxu0 0.0
    %139 = vmatprep.subr.mxu0 0.0
    %140 = vmatpush1.msra.mxu0 0.0
    %141 = vmatprep.subr.mxu0 0.0
    %142 = vmatpush1.msra.mxu0 0.0
    %143 = vmatprep.subr.mxu0 0.0
    %144 = vmatpush1.msra.mxu0 0.0
    %145 = vmatprep.subr.mxu0 0.0
    %v146 = vand.u32 %v22, 4294901760
    %v147 = vsub.f32 %v22, %v146
    %v148 = vand.u32 %v147, 4294901760
    %v149 = vsub.f32 %v147, %v148
    %v150 = vand.u32 %v149, 4294901760
    %151 = vmatpush1.msra.mxu0 %v150
    %152 = vmatprep.subr.mxu0 0.0
    %v153 = vand.u32 %v21, 4294901760
    %v154 = vsub.f32 %v21, %v153
    %v155 = vand.u32 %v154, 4294901760
    %v156 = vsub.f32 %v154, %v155
    %v157 = vand.u32 %v156, 4294901760
    %158 = vmatpush1.msra.mxu0 %v157
    %159 = vmatprep.subr.mxu0 0.0
    %160 = vmatpush2.msra.mxu0 0.0
    %161 = vmatprep.subr.mxu0 0.0
    %162 = vmatpush2.msra.mxu0 0.0
    %163 = vmatprep.subr.mxu0 0.0
    %164 = vmatpush2.msra.mxu0 0.0
    %165 = vmatprep.subr.mxu0 0.0
    %166 = vmatpush2.msra.mxu0 0.0
    %167 = vmatprep.subr.mxu0 0.0
    %168 = vmatpush2.msra.mxu0 0.0
    %169 = vmatprep.subr.mxu0 0.0
    %170 = vmatpush2.msra.mxu0 0.0
    %171 = vmatprep.subr.mxu0 0.0
    %172 = vmatpush2.msra.mxu0 0.0
    %173 = vmatprep.subr.mxu0 0.0
    %174 = vmatpush2.msra.mxu0 0.0
    %175 = vmatprep.subr.mxu0 0.0
    %176 = vmatpush2.msra.mxu0 0.0
    %177 = vmatprep.subr.mxu0 0.0
    %178 = vmatpush2.msra.mxu0 0.0
    %179 = vmatprep.subr.mxu0 0.0
    %180 = vmatpush2.msra.mxu0 0.0
    %181 = vmatprep.subr.mxu0 0.0
    %182 = vmatpush2.msra.mxu0 0.0
    %183 = vmatprep.subr.mxu0 0.0
    %184 = vmatpush2.msra.mxu0 0.0
    %185 = vmatprep.subr.mxu0 0.0
    %186 = vmatpush2.msra.mxu0 0.0
    %187 = vmatprep.subr.mxu0 0.0
    %188 = vmatpush2.msra.mxu0 0.0
    %189 = vmatprep.subr.mxu0 0.0
    %190 = vmatpush2.msra.mxu0 0.0
    %191 = vmatprep.mubr.f32.mxu0 0.0
    %v192 = vand.u32 %v25, 4294901760
    %193 = vmatmul.mubr.f32.gmra.mxu0 %v192
    %v194 = vpop.f32.mrf.mxu0
    %v195 = vadd.f32 %v104, %v194
    %v196 = vpop.f32.mrf.mxu0
    %197 = vmatprep.mubr.f32.mxu0 0.0
    %v198 = vand.u32 %v28, 4294901760
    %199 = vmatmul.mubr.f32.gmra.mxu0 %v198
    %v200 = vpop.f32.mrf.mxu0
    %v201 = vadd.f32 %v114, %v200
    %v202 = vpop.f32.mrf.mxu0
    %203 = vdwg.mxu0
    %204 = vmatprep.subr.mxu0 0.0
    %205 = vmatpush1.msra.mxu0 0.0
    %206 = vmatprep.subr.mxu0 0.0
    %207 = vmatpush1.msra.mxu0 0.0
    %208 = vmatprep.subr.mxu0 0.0
    %209 = vmatpush1.msra.mxu0 0.0
    %210 = vmatprep.subr.mxu0 0.0
    %211 = vmatpush1.msra.mxu0 0.0
    %212 = vmatprep.subr.mxu0 0.0
    %213 = vmatpush1.msra.mxu0 0.0
    %214 = vmatprep.subr.mxu0 0.0
    %215 = vmatpush1.msra.mxu0 0.0
    %216 = vmatprep.subr.mxu0 0.0
    %217 = vmatpush1.msra.mxu0 0.0
    %218 = vmatprep.subr.mxu0 0.0
    %219 = vmatpush1.msra.mxu0 0.0
    %220 = vmatprep.subr.mxu0 0.0
    %221 = vmatpush1.msra.mxu0 0.0
    %222 = vmatprep.subr.mxu0 0.0
    %223 = vmatpush1.msra.mxu0 0.0
    %224 = vmatprep.subr.mxu0 0.0
    %225 = vmatpush1.msra.mxu0 0.0
    %226 = vmatprep.subr.mxu0 0.0
    %227 = vmatpush1.msra.mxu0 0.0
    %228 = vmatprep.subr.mxu0 0.0
    %229 = vmatpush1.msra.mxu0 0.0
    %230 = vmatprep.subr.mxu0 0.0
    %231 = vmatpush1.msra.mxu0 0.0
    %232 = vmatprep.subr.mxu0 0.0
    %v233 = vand.u32 %v22, 4294901760
    %v234 = vsub.f32 %v22, %v233
    %235 = vmatpush1.msra.mxu0 %v234
    %236 = vmatprep.subr.mxu0 0.0
    %v237 = vand.u32 %v21, 4294901760
    %v238 = vsub.f32 %v21, %v237
    %239 = vmatpush1.msra.mxu0 %v238
    %240 = vmatprep.subr.mxu0 0.0
    %241 = vmatpush2.msra.mxu0 0.0
    %242 = vmatprep.subr.mxu0 0.0
    %243 = vmatpush2.msra.mxu0 0.0
    %244 = vmatprep.subr.mxu0 0.0
    %245 = vmatpush2.msra.mxu0 0.0
    %246 = vmatprep.subr.mxu0 0.0
    %247 = vmatpush2.msra.mxu0 0.0
    %248 = vmatprep.subr.mxu0 0.0
    %249 = vmatpush2.msra.mxu0 0.0
    %250 = vmatprep.subr.mxu0 0.0
    %251 = vmatpush2.msra.mxu0 0.0
    %252 = vmatprep.subr.mxu0 0.0
    %253 = vmatpush2.msra.mxu0 0.0
    %254 = vmatprep.subr.mxu0 0.0
    %255 = vmatpush2.msra.mxu0 0.0
    %256 = vmatprep.subr.mxu0 0.0
    %257 = vmatpush2.msra.mxu0 0.0
    %258 = vmatprep.subr.mxu0 0.0
    %259 = vmatpush2.msra.mxu0 0.0
    %260 = vmatprep.subr.mxu0 0.0
    %261 = vmatpush2.msra.mxu0 0.0
    %262 = vmatprep.subr.mxu0 0.0
    %263 = vmatpush2.msra.mxu0 0.0
    %264 = vmatprep.subr.mxu0 0.0
    %265 = vmatpush2.msra.mxu0 0.0
    %266 = vmatprep.subr.mxu0 0.0
    %267 = vmatpush2.msra.mxu0 0.0
    %268 = vmatprep.subr.mxu0 0.0
    %269 = vmatpush2.msra.mxu0 0.0
    %270 = vmatprep.subr.mxu0 0.0
    %271 = vmatpush2.msra.mxu0 0.0
    %272 = vmatprep.mubr.f32.mxu0 0.0
    %v273 = vand.u32 %v25, 4294901760
    %v274 = vsub.f32 %v25, %v273
    %275 = vmatmul.mubr.f32.gmra.mxu0 %v274
    %v276 = vpop.f32.mrf.mxu0
    %v277 = vadd.f32 %v195, %v276
    %v278 = vpop.f32.mrf.mxu0
    %279 = vmatprep.mubr.f32.mxu0 0.0
    %v280 = vand.u32 %v28, 4294901760
    %v281 = vsub.f32 %v28, %v280
    %282 = vmatmul.mubr.f32.gmra.mxu0 %v281
    %v283 = vpop.f32.mrf.mxu0
    %v284 = vadd.f32 %v201, %v283
    %v285 = vpop.f32.mrf.mxu0
    %286 = vdwg.mxu0
    %287 = vmatprep.subr.mxu0 0.0
    %288 = vmatpush1.msra.mxu0 0.0
    %289 = vmatprep.subr.mxu0 0.0
    %290 = vmatpush1.msra.mxu0 0.0
    %291 = vmatprep.subr.mxu0 0.0
    %292 = vmatpush1.msra.mxu0 0.0
    %293 = vmatprep.subr.mxu0 0.0
    %294 = vmatpush1.msra.mxu0 0.0
    %295 = vmatprep.subr.mxu0 0.0
    %296 = vmatpush1.msra.mxu0 0.0
    %297 = vmatprep.subr.mxu0 0.0
    %298 = vmatpush1.msra.mxu0 0.0
    %299 = vmatprep.subr.mxu0 0.0
    %300 = vmatpush1.msra.mxu0 0.0
    %301 = vmatprep.subr.mxu0 0.0
    %302 = vmatpush1.msra.mxu0 0.0
    %303 = vmatprep.subr.mxu0 0.0
    %304 = vmatpush1.msra.mxu0 0.0
    %305 = vmatprep.subr.mxu0 0.0
    %306 = vmatpush1.msra.mxu0 0.0
    %307 = vmatprep.subr.mxu0 0.0
    %308 = vmatpush1.msra.mxu0 0.0
    %309 = vmatprep.subr.mxu0 0.0
    %310 = vmatpush1.msra.mxu0 0.0
    %311 = vmatprep.subr.mxu0 0.0
    %312 = vmatpush1.msra.mxu0 0.0
    %313 = vmatprep.subr.mxu0 0.0
    %314 = vmatpush1.msra.mxu0 0.0
    %315 = vmatprep.subr.mxu0 0.0
    %v316 = vand.u32 %v22, 4294901760
    %317 = vmatpush1.msra.mxu0 %v316
    %318 = vmatprep.subr.mxu0 0.0
    %v319 = vand.u32 %v21, 4294901760
    %320 = vmatpush1.msra.mxu0 %v319
    %321 = vmatprep.subr.mxu0 0.0
    %322 = vmatpush2.msra.mxu0 0.0
    %323 = vmatprep.subr.mxu0 0.0
    %324 = vmatpush2.msra.mxu0 0.0
    %325 = vmatprep.subr.mxu0 0.0
    %326 = vmatpush2.msra.mxu0 0.0
    %327 = vmatprep.subr.mxu0 0.0
    %328 = vmatpush2.msra.mxu0 0.0
    %329 = vmatprep.subr.mxu0 0.0
    %330 = vmatpush2.msra.mxu0 0.0
    %331 = vmatprep.subr.mxu0 0.0
    %332 = vmatpush2.msra.mxu0 0.0
    %333 = vmatprep.subr.mxu0 0.0
    %334 = vmatpush2.msra.mxu0 0.0
    %335 = vmatprep.subr.mxu0 0.0
    %336 = vmatpush2.msra.mxu0 0.0
    %337 = vmatprep.subr.mxu0 0.0
    %338 = vmatpush2.msra.mxu0 0.0
    %339 = vmatprep.subr.mxu0 0.0
    %340 = vmatpush2.msra.mxu0 0.0
    %341 = vmatprep.subr.mxu0 0.0
    %342 = vmatpush2.msra.mxu0 0.0
    %343 = vmatprep.subr.mxu0 0.0
    %344 = vmatpush2.msra.mxu0 0.0
    %345 = vmatprep.subr.mxu0 0.0
    %346 = vmatpush2.msra.mxu0 0.0
    %347 = vmatprep.subr.mxu0 0.0
    %348 = vmatpush2.msra.mxu0 0.0
    %349 = vmatprep.subr.mxu0 0.0
    %350 = vmatpush2.msra.mxu0 0.0
    %351 = vmatprep.subr.mxu0 0.0
    %352 = vmatpush2.msra.mxu0 0.0
    %353 = vmatprep.mubr.f32.mxu0 0.0
    %v354 = vand.u32 %v25, 4294901760
    %v355 = vsub.f32 %v25, %v354
    %v356 = vand.u32 %v355, 4294901760
    %357 = vmatmul.mubr.f32.gmra.mxu0 %v356
    %v358 = vpop.f32.mrf.mxu0
    %v359 = vadd.f32 %v277, %v358
    %v360 = vpop.f32.mrf.mxu0
    %361 = vmatprep.mubr.f32.mxu0 0.0
    %v362 = vand.u32 %v28, 4294901760
    %v363 = vsub.f32 %v28, %v362
    %v364 = vand.u32 %v363, 4294901760
    %365 = vmatmul.mubr.f32.gmra.mxu0 %v364
    %v366 = vpop.f32.mrf.mxu0
    %v367 = vadd.f32 %v284, %v366
    %v368 = vpop.f32.mrf.mxu0
    %369 = vdwg.mxu0
    %370 = vmatprep.subr.mxu0 0.0
    %371 = vmatpush1.msra.mxu0 0.0
    %372 = vmatprep.subr.mxu0 0.0
    %373 = vmatpush1.msra.mxu0 0.0
    %374 = vmatprep.subr.mxu0 0.0
    %375 = vmatpush1.msra.mxu0 0.0
    %376 = vmatprep.subr.mxu0 0.0
    %377 = vmatpush1.msra.mxu0 0.0
    %378 = vmatprep.subr.mxu0 0.0
    %379 = vmatpush1.msra.mxu0 0.0
    %380 = vmatprep.subr.mxu0 0.0
    %381 = vmatpush1.msra.mxu0 0.0
    %382 = vmatprep.subr.mxu0 0.0
    %383 = vmatpush1.msra.mxu0 0.0
    %384 = vmatprep.subr.mxu0 0.0
    %385 = vmatpush1.msra.mxu0 0.0
    %386 = vmatprep.subr.mxu0 0.0
    %387 = vmatpush1.msra.mxu0 0.0
    %388 = vmatprep.subr.mxu0 0.0
    %389 = vmatpush1.msra.mxu0 0.0
    %390 = vmatprep.subr.mxu0 0.0
    %391 = vmatpush1.msra.mxu0 0.0
    %392 = vmatprep.subr.mxu0 0.0
    %393 = vmatpush1.msra.mxu0 0.0
    %394 = vmatprep.subr.mxu0 0.0
    %395 = vmatpush1.msra.mxu0 0.0
    %396 = vmatprep.subr.mxu0 0.0
    %397 = vmatpush1.msra.mxu0 0.0
    %398 = vmatprep.subr.mxu0 0.0
    %v399 = vand.u32 %v22, 4294901760
    %v400 = vsub.f32 %v22, %v399
    %v401 = vand.u32 %v400, 4294901760
    %402 = vmatpush1.msra.mxu0 %v401
    %403 = vmatprep.subr.mxu0 0.0
    %v404 = vand.u32 %v21, 4294901760
    %v405 = vsub.f32 %v21, %v404
    %v406 = vand.u32 %v405, 4294901760
    %407 = vmatpush1.msra.mxu0 %v406
    %408 = vmatprep.subr.mxu0 0.0
    %409 = vmatpush2.msra.mxu0 0.0
    %410 = vmatprep.subr.mxu0 0.0
    %411 = vmatpush2.msra.mxu0 0.0
    %412 = vmatprep.subr.mxu0 0.0
    %413 = vmatpush2.msra.mxu0 0.0
    %414 = vmatprep.subr.mxu0 0.0
    %415 = vmatpush2.msra.mxu0 0.0
    %416 = vmatprep.subr.mxu0 0.0
    %417 = vmatpush2.msra.mxu0 0.0
    %418 = vmatprep.subr.mxu0 0.0
    %419 = vmatpush2.msra.mxu0 0.0
    %420 = vmatprep.subr.mxu0 0.0
    %421 = vmatpush2.msra.mxu0 0.0
    %422 = vmatprep.subr.mxu0 0.0
    %423 = vmatpush2.msra.mxu0 0.0
    %424 = vmatprep.subr.mxu0 0.0
    %425 = vmatpush2.msra.mxu0 0.0
    %426 = vmatprep.subr.mxu0 0.0
    %427 = vmatpush2.msra.mxu0 0.0
    %428 = vmatprep.subr.mxu0 0.0
    %429 = vmatpush2.msra.mxu0 0.0
    %430 = vmatprep.subr.mxu0 0.0
    %431 = vmatpush2.msra.mxu0 0.0
    %432 = vmatprep.subr.mxu0 0.0
    %433 = vmatpush2.msra.mxu0 0.0
    %434 = vmatprep.subr.mxu0 0.0
    %435 = vmatpush2.msra.mxu0 0.0
    %436 = vmatprep.subr.mxu0 0.0
    %437 = vmatpush2.msra.mxu0 0.0
    %438 = vmatprep.subr.mxu0 0.0
    %439 = vmatpush2.msra.mxu0 0.0
    %440 = vmatprep.mubr.f32.mxu0 0.0
    %v441 = vand.u32 %v25, 4294901760
    %442 = vmatmul.mubr.f32.gmra.mxu0 %v441
    %v443 = vpop.f32.mrf.mxu0
    %v444 = vadd.f32 %v359, %v443
    %v445 = vpop.f32.mrf.mxu0
    %446 = vmatprep.mubr.f32.mxu0 0.0
    %v447 = vand.u32 %v28, 4294901760
    %448 = vmatmul.mubr.f32.gmra.mxu0 %v447
    %v449 = vpop.f32.mrf.mxu0
    %v450 = vadd.f32 %v367, %v449
    %v451 = vpop.f32.mrf.mxu0
    %452 = vdwg.mxu0
    %453 = vmatprep.subr.mxu0 0.0
    %454 = vmatpush1.msra.mxu0 0.0
    %455 = vmatprep.subr.mxu0 0.0
    %456 = vmatpush1.msra.mxu0 0.0
    %457 = vmatprep.subr.mxu0 0.0
    %458 = vmatpush1.msra.mxu0 0.0
    %459 = vmatprep.subr.mxu0 0.0
    %460 = vmatpush1.msra.mxu0 0.0
    %461 = vmatprep.subr.mxu0 0.0
    %462 = vmatpush1.msra.mxu0 0.0
    %463 = vmatprep.subr.mxu0 0.0
    %464 = vmatpush1.msra.mxu0 0.0
    %465 = vmatprep.subr.mxu0 0.0
    %466 = vmatpush1.msra.mxu0 0.0
    %467 = vmatprep.subr.mxu0 0.0
    %468 = vmatpush1.msra.mxu0 0.0
    %469 = vmatprep.subr.mxu0 0.0
    %470 = vmatpush1.msra.mxu0 0.0
    %471 = vmatprep.subr.mxu0 0.0
    %472 = vmatpush1.msra.mxu0 0.0
    %473 = vmatprep.subr.mxu0 0.0
    %474 = vmatpush1.msra.mxu0 0.0
    %475 = vmatprep.subr.mxu0 0.0
    %476 = vmatpush1.msra.mxu0 0.0
    %477 = vmatprep.subr.mxu0 0.0
    %478 = vmatpush1.msra.mxu0 0.0
    %479 = vmatprep.subr.mxu0 0.0
    %480 = vmatpush1.msra.mxu0 0.0
    %481 = vmatprep.subr.mxu0 0.0
    %v482 = vand.u32 %v22, 4294901760
    %483 = vmatpush1.msra.mxu0 %v482
    %484 = vmatprep.subr.mxu0 0.0
    %v485 = vand.u32 %v21, 4294901760
    %486 = vmatpush1.msra.mxu0 %v485
    %487 = vmatprep.subr.mxu0 0.0
    %488 = vmatpush2.msra.mxu0 0.0
    %489 = vmatprep.subr.mxu0 0.0
    %490 = vmatpush2.msra.mxu0 0.0
    %491 = vmatprep.subr.mxu0 0.0
    %492 = vmatpush2.msra.mxu0 0.0
    %493 = vmatprep.subr.mxu0 0.0
    %494 = vmatpush2.msra.mxu0 0.0
    %495 = vmatprep.subr.mxu0 0.0
    %496 = vmatpush2.msra.mxu0 0.0
    %497 = vmatprep.subr.mxu0 0.0
    %498 = vmatpush2.msra.mxu0 0.0
    %499 = vmatprep.subr.mxu0 0.0
    %500 = vmatpush2.msra.mxu0 0.0
    %501 = vmatprep.subr.mxu0 0.0
    %502 = vmatpush2.msra.mxu0 0.0
    %503 = vmatprep.subr.mxu0 0.0
    %504 = vmatpush2.msra.mxu0 0.0
    %505 = vmatprep.subr.mxu0 0.0
    %506 = vmatpush2.msra.mxu0 0.0
    %507 = vmatprep.subr.mxu0 0.0
    %508 = vmatpush2.msra.mxu0 0.0
    %509 = vmatprep.subr.mxu0 0.0
    %510 = vmatpush2.msra.mxu0 0.0
    %511 = vmatprep.subr.mxu0 0.0
    %512 = vmatpush2.msra.mxu0 0.0
    %513 = vmatprep.subr.mxu0 0.0
    %514 = vmatpush2.msra.mxu0 0.0
    %515 = vmatprep.subr.mxu0 0.0
    %516 = vmatpush2.msra.mxu0 0.0
    %517 = vmatprep.subr.mxu0 0.0
    %518 = vmatpush2.msra.mxu0 0.0
    %519 = vmatprep.mubr.f32.mxu0 0.0
    %v520 = vand.u32 %v25, 4294901760
    %521 = vmatmul.mubr.f32.gmra.mxu0 %v520
    %v522 = vpop.f32.mrf.mxu0
    %v523 = vadd.f32 %v444, %v522
    %v524 = vpop.f32.mrf.mxu0
    %525 = vmatprep.mubr.f32.mxu0 0.0
    %v526 = vand.u32 %v28, 4294901760
    %527 = vmatmul.mubr.f32.gmra.mxu0 %v526
    %v528 = vpop.f32.mrf.mxu0
    %v529 = vadd.f32 %v450, %v528
    %v530 = vpop.f32.mrf.mxu0
    %531 = vdwg.mxu0
    %s532 = scalar_lea.vmem %s2, %s19
    %vm533 = vcmask 64512
    %534 = vst.msk [vmem:[%s532] sm:$0xff] %vm533, %v523
    %535 = vst.msk [vmem:[%s532 + $0x8] sm:$0xff] %vm533, %v529
  $region14: #{tpu_custom_call.1} parent=0 // loop_footer
    %s18 = sadd.s32 1, %s14
  $region15: #{tpu_custom_call.1} parent=0 // loop_footer_branch
    %13 = sbr.rel target = $region11
  $region16: #{tpu_custom_call.1} parent=0 // loop_exit
    _
  // Predicated region
  $region17: #{tpu_custom_call.1} parent=0 // pred_check
    _
  $region18: #{tpu_custom_call.1} parent=0 // pred_check_branch
    %537 = sbr.rel (0) target = $region20
  $region19: #{tpu_custom_call.1} parent=0 // pred_region
    _
  $region20: #{tpu_custom_call.1} parent=0 // pred_fallthru
    _
  // Predicated region
  $region21: #{tpu_custom_call.1} parent=0 // pred_check
    _
  $region22: #{tpu_custom_call.1} parent=0 // pred_check_branch
    %539 = sbr.rel (0) target = $region24
  $region23: #{tpu_custom_call.1} parent=0 // pred_region
    _
  $region24: #{tpu_custom_call.1} parent=0 // pred_fallthru
    _

</llo_original>
